<compile_context>
chip_gen: v6e
topology: v6e:2x2x1
jax: 0.10.0
libtpu: 0.0.40
codegen_flags: <defaults>
</compile_context>

<pallas_src>
import functools

import jax
import jax.numpy as jnp
from jax.experimental import pallas as pl
from jax.experimental.pallas import tpu as pltpu


def _round_up(x, m):
    return (x + m - 1) // m * m


def _pre_kernel(gains_ref, img_ref, out_ref, *, a, b):
    # img_ref: (3, TH, W) uint8 tile; cast once on the VMEM tile.
    img = img_ref[...].astype(jnp.float32)          # values in [0, 255]
    inv255 = jnp.float32(1.0 / 255.0)

    # ---- channels 0..2 : ToTensor()(img) ------------------------------------
    x = img * inv255                                 # reused for gamma below
    out_ref[pl.ds(0, 3), :, :] = x

    # ---- channels 3..5 : grey-world white balance ----------------------------
    # cv2.merge([b, g, r]) reverses channel order; gains_ref already holds the
    # gains in merged order: [k/m2, k/m1, k/m0].  cv2.addWeighted rounds to
    # nearest and saturates to uint8 before ToTensor.
    wb = jnp.concatenate(
        [
            (img[2] * gains_ref[0])[None],
            (img[1] * gains_ref[1])[None],
            (img[0] * gains_ref[2])[None],
        ],
        axis=0,
    )
    out_ref[pl.ds(3, 3), :, :] = jnp.clip(jnp.round(wb), 0.0, 255.0) * inv255

    # ---- channels 6..8 : brightness  y = a*img + b ; y[y>255]=255 ; round ----
    # TODO(synk): numpy's uint8 cast wraps negatives mod 256; we clamp at 0
    # instead (identical whenever a > 0 and b >= 0).
    y = jnp.round(jnp.float32(a) * img + jnp.float32(b))
    out_ref[pl.ds(6, 3), :, :] = jnp.clip(y, 0.0, 255.0) * inv255

    # ---- channels 9..11 : gamma  (img/255)^2.5 * 255, uint8 truncation -------
    # pow via exp/log (rides the otherwise-idle EUP slot); guard x == 0.
    safe = jnp.where(x > 0.0, x, 1.0)
    p = jnp.exp(jnp.float32(2.5) * jnp.log(safe))
    p = jnp.where(x > 0.0, p, 0.0)
    out_ref[pl.ds(9, 3), :, :] = jnp.floor(p * 255.0) * inv255


def pre_forward(img_hwc_u8, a, b, tile_h=128):
    """img_hwc_u8: (H, W, 3) uint8 image.  Returns (1, 12, H, W) float32."""
    H, W, C = img_hwc_u8.shape
    assert C == 3, "expected a 3-channel HWC image"

    # ---- grey-world means, hoisted out of the kernel --------------------------
    # Exact integer accumulation (cv2.mean accumulates in double); a single f32
    # division afterwards keeps the gains accurate.
    sums = jnp.sum(img_hwc_u8.astype(jnp.int32), axis=(0, 1))        # (3,)
    m = sums.astype(jnp.float32) / jnp.float32(H * W)                # per-channel mean
    k = (m[0] + m[1] + m[2]) / jnp.float32(3.0)
    gains = (k / m)[::-1].astype(jnp.float32)   # merged order: [k/m2, k/m1, k/m0]

    # ---- layout: CHW uint8, pad to TPU-friendly tile sizes --------------------
    # TH multiple of 32 (uint8 sublane tile; also a multiple of 8 for f32 out),
    # W padded to a multiple of 128 so output stores are lane-dense/unmasked.
    TH = min(int(tile_h), _round_up(H, 32))
    H_pad = _round_up(H, TH)
    W_pad = _round_up(W, 128)

    img_chw = jnp.transpose(img_hwc_u8, (2, 0, 1))                   # (3, H, W) uint8
    if H_pad != H or W_pad != W:
        img_chw = jnp.pad(img_chw, ((0, 0), (0, H_pad - H), (0, W_pad - W)))

    out = pl.pallas_call(
        functools.partial(_pre_kernel, a=float(a), b=float(b)),
        out_shape=jax.ShapeDtypeStruct((12, H_pad, W_pad), jnp.float32),
        grid_spec=pltpu.PrefetchScalarGridSpec(
            num_scalar_prefetch=1,
            grid=(H_pad // TH,),
            in_specs=[pl.BlockSpec((3, TH, W_pad), lambda i, g_ref: (0, i, 0))],
            out_specs=pl.BlockSpec((12, TH, W_pad), lambda i, g_ref: (0, i, 0)),
        ),
        compiler_params=pltpu.CompilerParams(
            dimension_semantics=("parallel",),
            vmem_limit_bytes=64 * 1024 * 1024,
        ),
    )(gains, img_chw)

    # Drop padding, then hazef.expand(1, 12, H, W).
    out = out[:, :H, :W]
    return out[None, :, :, :]


if __name__ == "__main__":
    key = jax.random.PRNGKey(0)
    H, W = 16, 16
    # deterministic synthetic uint8 image, values 0..255
    img = jax.random.randint(key, (H, W, 3), 0, 256, dtype=jnp.int32).astype(jnp.uint8)

    # deterministic "parameters" of pre(a, b)
    a, b = 1.2, 30.0

    out = pre_forward(img, a, b)
    out = jax.block_until_ready(out)
    assert out.shape == (1, 12, H, W), out.shape
    assert out.dtype == jnp.float32
    print("KERNEL_OK")
</pallas_src>

<mosaic_0001>
module attributes {stable_mosaic.version = 11 : i64} {
  func.func @_pre_kernel(%arg0: i32, %arg1: memref<3xf32, #tpu.memory_space<smem>>, %arg2: memref<3x32x128xi8, #tpu.memory_space<vmem>>, %arg3: memref<12x32x128xf32, #tpu.memory_space<vmem>>) attributes {dimension_semantics = [#tpu.dimension_semantics<parallel>], iteration_bounds = array<i64: 1>, scalar_prefetch = 1 : i64, scratch_operands = 0 : i64, tpu.core_type = #tpu.core_type<tc>, window_params = [{transform_indices = @transform_0, window_bounds = array<i64: 3, 32, 128>}, {transform_indices = @transform_1, window_bounds = array<i64: 12, 32, 128>}]} {
    %c0 = arith.constant 0 : index
    %c0_0 = arith.constant 0 : index
    %c0_1 = arith.constant 0 : index
    %0 = vector.load %arg2[%c0, %c0_0, %c0_1] : memref<3x32x128xi8, #tpu.memory_space<vmem>>, vector<3x32x128xi8>
    %1 = arith.uitofp %0 : vector<3x32x128xi8> to vector<3x32x128xf32>
    %cst = arith.constant 0.00392156886 : f32
    %2 = vector.broadcast %cst : f32 to vector<3x32x128xf32>
    %3 = arith.mulf %1, %2 : vector<3x32x128xf32>
    %c0_2 = arith.constant 0 : index
    %c0_3 = arith.constant 0 : index
    %c0_4 = arith.constant 0 : index
    %4 = vector.load %arg3[%c0_2, %c0_3, %c0_4] : memref<12x32x128xf32, #tpu.memory_space<vmem>>, vector<3x32x128xf32>
    tpu.vector_store %arg3[%c0_2, %c0_3, %c0_4], %3 {strides = array<i32>} : memref<12x32x128xf32, #tpu.memory_space<vmem>>, vector<3x32x128xf32>,
    %5 = vector.extract_strided_slice %1 {offsets = [2, 0, 0], sizes = [1, 32, 128], strides = [1, 1, 1]} : vector<3x32x128xf32> to vector<1x32x128xf32>
    %6 = vector.shape_cast %5 : vector<1x32x128xf32> to vector<32x128xf32>
    %c0_5 = arith.constant 0 : index
    %7 = memref.load %arg1[%c0_5] : memref<3xf32, #tpu.memory_space<smem>>
    %8 = vector.broadcast %7 : f32 to vector<32x128xf32>
    %9 = arith.mulf %6, %8 : vector<32x128xf32>
    %10 = vector.shape_cast %9 : vector<32x128xf32> to vector<1x32x128xf32>
    %11 = vector.extract_strided_slice %1 {offsets = [1, 0, 0], sizes = [1, 32, 128], strides = [1, 1, 1]} : vector<3x32x128xf32> to vector<1x32x128xf32>
    %12 = vector.shape_cast %11 : vector<1x32x128xf32> to vector<32x128xf32>
    %c1 = arith.constant 1 : index
    %13 = memref.load %arg1[%c1] : memref<3xf32, #tpu.memory_space<smem>>
    %14 = vector.broadcast %13 : f32 to vector<32x128xf32>
    %15 = arith.mulf %12, %14 : vector<32x128xf32>
    %16 = vector.shape_cast %15 : vector<32x128xf32> to vector<1x32x128xf32>
    %17 = vector.extract_strided_slice %1 {offsets = [0, 0, 0], sizes = [1, 32, 128], strides = [1, 1, 1]} : vector<3x32x128xf32> to vector<1x32x128xf32>
    %18 = vector.shape_cast %17 : vector<1x32x128xf32> to vector<32x128xf32>
    %c2 = arith.constant 2 : index
    %19 = memref.load %arg1[%c2] : memref<3xf32, #tpu.memory_space<smem>>
    %20 = vector.broadcast %19 : f32 to vector<32x128xf32>
    %21 = arith.mulf %18, %20 : vector<32x128xf32>
    %22 = vector.shape_cast %21 : vector<32x128xf32> to vector<1x32x128xf32>
    %23 = tpu.concatenate %10, %16, %22 in 0 : vector<1x32x128xf32>, vector<1x32x128xf32>, vector<1x32x128xf32> -> vector<3x32x128xf32>
    %24 = math.roundeven %23 : vector<3x32x128xf32>
    %cst_6 = arith.constant 0.000000e+00 : f32
    %cst_7 = arith.constant 2.550000e+02 : f32
    %25 = vector.broadcast %cst_6 : f32 to vector<3x32x128xf32>
    %26 = arith.maximumf %25, %24 : vector<3x32x128xf32>
    %27 = vector.broadcast %cst_7 : f32 to vector<3x32x128xf32>
    %28 = arith.minimumf %27, %26 : vector<3x32x128xf32>
    %cst_8 = arith.constant 0.00392156886 : f32
    %29 = vector.broadcast %cst_8 : f32 to vector<3x32x128xf32>
    %30 = arith.mulf %28, %29 : vector<3x32x128xf32>
    %c3 = arith.constant 3 : index
    %c0_9 = arith.constant 0 : index
    %c0_10 = arith.constant 0 : index
    %31 = vector.load %arg3[%c3, %c0_9, %c0_10] : memref<12x32x128xf32, #tpu.memory_space<vmem>>, vector<3x32x128xf32>
    tpu.vector_store %arg3[%c3, %c0_9, %c0_10], %30 {strides = array<i32>} : memref<12x32x128xf32, #tpu.memory_space<vmem>>, vector<3x32x128xf32>,
    %cst_11 = arith.constant 1.200000e+00 : f32
    %32 = vector.broadcast %cst_11 : f32 to vector<3x32x128xf32>
    %33 = arith.mulf %32, %1 : vector<3x32x128xf32>
    %cst_12 = arith.constant 3.000000e+01 : f32
    %34 = vector.broadcast %cst_12 : f32 to vector<3x32x128xf32>
    %35 = arith.addf %33, %34 : vector<3x32x128xf32>
    %36 = math.roundeven %35 : vector<3x32x128xf32>
    %cst_13 = arith.constant 0.000000e+00 : f32
    %cst_14 = arith.constant 2.550000e+02 : f32
    %37 = vector.broadcast %cst_13 : f32 to vector<3x32x128xf32>
    %38 = arith.maximumf %37, %36 : vector<3x32x128xf32>
    %39 = vector.broadcast %cst_14 : f32 to vector<3x32x128xf32>
    %40 = arith.minimumf %39, %38 : vector<3x32x128xf32>
    %cst_15 = arith.constant 0.00392156886 : f32
    %41 = vector.broadcast %cst_15 : f32 to vector<3x32x128xf32>
    %42 = arith.mulf %40, %41 : vector<3x32x128xf32>
    %c6 = arith.constant 6 : index
    %c0_16 = arith.constant 0 : index
    %c0_17 = arith.constant 0 : index
    %43 = vector.load %arg3[%c6, %c0_16, %c0_17] : memref<12x32x128xf32, #tpu.memory_space<vmem>>, vector<3x32x128xf32>
    tpu.vector_store %arg3[%c6, %c0_16, %c0_17], %42 {strides = array<i32>} : memref<12x32x128xf32, #tpu.memory_space<vmem>>, vector<3x32x128xf32>,
    %cst_18 = arith.constant 0.000000e+00 : f32
    %44 = vector.broadcast %cst_18 : f32 to vector<3x32x128xf32>
    %45 = arith.cmpf ogt, %3, %44 : vector<3x32x128xf32>
    %cst_19 = arith.constant 1.000000e+00 : f32
    %46 = vector.broadcast %cst_19 : f32 to vector<3x32x128xf32>
    %47 = arith.select %45, %3, %46 : vector<3x32x128xi1>, vector<3x32x128xf32>
    %48 = math.log %47 : vector<3x32x128xf32>
    %cst_20 = arith.constant 2.500000e+00 : f32
    %49 = vector.broadcast %cst_20 : f32 to vector<3x32x128xf32>
    %50 = arith.mulf %49, %48 : vector<3x32x128xf32>
    %51 = math.exp %50 : vector<3x32x128xf32>
    %cst_21 = arith.constant 0.000000e+00 : f32
    %52 = vector.broadcast %cst_21 : f32 to vector<3x32x128xf32>
    %53 = arith.cmpf ogt, %3, %52 : vector<3x32x128xf32>
    %cst_22 = arith.constant 0.000000e+00 : f32
    %54 = vector.broadcast %cst_22 : f32 to vector<3x32x128xf32>
    %55 = arith.select %53, %51, %54 : vector<3x32x128xi1>, vector<3x32x128xf32>
    %cst_23 = arith.constant 2.550000e+02 : f32
    %56 = vector.broadcast %cst_23 : f32 to vector<3x32x128xf32>
    %57 = arith.mulf %55, %56 : vector<3x32x128xf32>
    %58 = math.floor %57 : vector<3x32x128xf32>
    %cst_24 = arith.constant 0.00392156886 : f32
    %59 = vector.broadcast %cst_24 : f32 to vector<3x32x128xf32>
    %60 = arith.mulf %58, %59 : vector<3x32x128xf32>
    %c9 = arith.constant 9 : index
    %c0_25 = arith.constant 0 : index
    %c0_26 = arith.constant 0 : index
    %61 = vector.load %arg3[%c9, %c0_25, %c0_26] : memref<12x32x128xf32, #tpu.memory_space<vmem>>, vector<3x32x128xf32>
    tpu.vector_store %arg3[%c9, %c0_25, %c0_26], %60 {strides = array<i32>} : memref<12x32x128xf32, #tpu.memory_space<vmem>>, vector<3x32x128xf32>,
    return
  }
  func.func @transform_0(%arg0: i32, %arg1: memref<3xf32, #tpu.memory_space<smem>>) -> (i32, i32, i32) {
    %c0_i32 = arith.constant 0 : i32
    %c0_i32_0 = arith.constant 0 : i32
    %c0_i32_1 = arith.constant 0 : i32
    return %c0_i32, %arg0, %c0_i32_0 : i32, i32, i32
  }
  func.func @transform_1(%arg0: i32, %arg1: memref<3xf32, #tpu.memory_space<smem>>) -> (i32, i32, i32) {
    %c0_i32 = arith.constant 0 : i32
    %c0_i32_0 = arith.constant 0 : i32
    %c0_i32_1 = arith.constant 0 : i32
    return %c0_i32, %arg0, %c0_i32_0 : i32, i32, i32
  }
}

</mosaic_0001>

<llo_original>
// kernel: tpu_custom_call.1
$region0: #{tpu_custom_call.1}
  #allocation0 [shape = 'u32[]', space=smem, size = 0x4, offset = 0x4, fixed_abs, tag = 'smem constant byte address 0x4 - core index']
  #allocation1 [shape = 'u32[144,128]{1,0:T(1,128)}', space=vmem, size = 0x12000, scoped, tag = 'internal scratch']
  #allocation2 [shape = 's32[1]{0}', space=sflag, size = 0x4, scoped, tag = 'scoped memory for tpu_custom_call.1']
  #allocation3 [shape = 'u8[512]{0}', space=smem, size = 0x200, scoped, tag = 'prefetched SMEM operand 0']
  %s0 = inlined_call_operand.hbm [shape: f32[3], index: 0, kind: input, shape index: {}]
  %s1 = inlined_call_operand.hbm [shape: u8[3,32,128], index: 1, kind: input, shape index: {}]
  %s2 = inlined_call_operand.hbm [shape: f32[12,32,128], index: 2, kind: output, shape index: {}]
  %s3 = sld [smem:[#allocation0]]
  $region18: #{tpu_custom_call.1} parent=0
    _
  %s5 = ssub.s32 1, %s3
  %s6 = scalar_select 0, %s5, %s3
  %8 = dma.hbm_to_smem %s0, 16, [#allocation3], [#allocation2]
  %9 = dma.done [#allocation2], 16
  %10 = sfence
  $region1: #{tpu_custom_call.1} parent=0
    #allocation4 [shape = 'u8[12288]{0}', space=vmem, size = 0x3000, scoped, tag = 'input window, operand 1, single buffered']
    #allocation5 [shape = 's32[1]{0}', space=sflag, size = 0x4, scoped, tag = 'scoped memory for tpu_custom_call.1']
    #allocation6 [shape = 's32[1]{0}', space=sflag, size = 0x4, scoped, tag = 'scoped memory for tpu_custom_call.1']
    #allocation7 [shape = 'u8[196608]{0}', space=vmem, size = 0x30000, scoped, tag = 'output window, operand 0, single buffered']
    %11 = vsyncpa [#allocation5], 0
    %12 = vsyncpa [#allocation6], 0
    // Predicated region
    $region2: #{tpu_custom_call.1} parent=1 // pred_check
      _
    $region3: #{tpu_custom_call.1} parent=1 // pred_check_branch
      %14 = sbr.rel (0) target = $region5
    $region4: #{tpu_custom_call.1} parent=1 // pred_region
      %s16 = ssub.s32 384, 384
      %17 = vsyncadd [#allocation5], %s16
      %s18 = sshll.u32 [#allocation4], 4
      %s19 = int_to_ptr.vmem [resolvable:$true] %s18
      %24 = dma.hbm_to_vmem [thread:$0]  %s1, 384, %s19, [#allocation5], 128, 128, 8
    $region5: #{tpu_custom_call.1} parent=1 // pred_fallthru
      _
    // Predicated region
    $region6: #{tpu_custom_call.1} parent=1 // pred_check
      _
    $region7: #{tpu_custom_call.1} parent=1 // pred_check_branch
      %26 = sbr.rel (0) target = $region9
    $region8: #{tpu_custom_call.1} parent=1 // pred_region
      %27 = dma.done [#allocation5], 384
    $region9: #{tpu_custom_call.1} parent=1 // pred_fallthru
      _
    %v28 = vld [vmem:[#allocation4] sm:$0xff]
    %v29 = vld [vmem:[#allocation4 + $0x8] sm:$0xff]
    %v30 = vld [vmem:[#allocation4 + $0x10] sm:$0xff]
    %v31 = vunpack.c.0.s8 %v28
    %v32 = vunpack.c.1.s8 %v28
    %v33 = vunpack.c.2.s8 %v28
    %v34 = vunpack.c.3.s8 %v28
    %v35 = vunpack.c.0.s8 %v29
    %v36 = vunpack.c.1.s8 %v29
    %v37 = vunpack.c.2.s8 %v29
    %v38 = vunpack.c.3.s8 %v29
    %v39 = vunpack.c.0.s8 %v30
    %v40 = vunpack.c.1.s8 %v30
    %v41 = vunpack.c.2.s8 %v30
    %v42 = vunpack.c.3.s8 %v30
    %v43 = vand.u32 %v31, 255
    %v44 = vand.u32 %v32, 255
    %v45 = vand.u32 %v33, 255
    %v46 = vand.u32 %v34, 255
    %v47 = vand.u32 %v35, 255
    %v48 = vand.u32 %v36, 255
    %v49 = vand.u32 %v37, 255
    %v50 = vand.u32 %v38, 255
    %v51 = vand.u32 %v39, 255
    %v52 = vand.u32 %v40, 255
    %v53 = vand.u32 %v41, 255
    %v54 = vand.u32 %v42, 255
    %v55 = vcvt.s32.f32 %v43
    %v56 = vcvt.s32.f32 %v44
    %v57 = vcvt.s32.f32 %v45
    %v58 = vcvt.s32.f32 %v46
    %v59 = vcvt.s32.f32 %v47
    %v60 = vcvt.s32.f32 %v48
    %v61 = vcvt.s32.f32 %v49
    %v62 = vcvt.s32.f32 %v50
    %v63 = vcvt.s32.f32 %v51
    %v64 = vcvt.s32.f32 %v52
    %v65 = vcvt.s32.f32 %v53
    %v66 = vcvt.s32.f32 %v54
    %v67 = vmul.f32 %v55, 0.003921569
    %v68 = vmul.f32 %v56, 0.003921569
    %v69 = vmul.f32 %v57, 0.003921569
    %v70 = vmul.f32 %v58, 0.003921569
    %v71 = vmul.f32 %v59, 0.003921569
    %v72 = vmul.f32 %v60, 0.003921569
    %v73 = vmul.f32 %v61, 0.003921569
    %v74 = vmul.f32 %v62, 0.003921569
    %v75 = vmul.f32 %v63, 0.003921569
    %v76 = vmul.f32 %v64, 0.003921569
    %v77 = vmul.f32 %v65, 0.003921569
    %v78 = vmul.f32 %v66, 0.003921569
    %79 = vst [vmem:[#allocation7] sm:$0xff] %v67
    %80 = vst [vmem:[#allocation7 + $0x8] sm:$0xff] %v68
    %81 = vst [vmem:[#allocation7 + $0x10] sm:$0xff] %v69
    %82 = vst [vmem:[#allocation7 + $0x18] sm:$0xff] %v70
    %83 = vst [vmem:[#allocation7 + $0x20] sm:$0xff] %v71
    %84 = vst [vmem:[#allocation7 + $0x28] sm:$0xff] %v72
    %85 = vst [vmem:[#allocation7 + $0x30] sm:$0xff] %v73
    %86 = vst [vmem:[#allocation7 + $0x38] sm:$0xff] %v74
    %87 = vst [vmem:[#allocation7 + $0x40] sm:$0xff] %v75
    %88 = vst [vmem:[#allocation7 + $0x48] sm:$0xff] %v76
    %89 = vst [vmem:[#allocation7 + $0x50] sm:$0xff] %v77
    %90 = vst [vmem:[#allocation7 + $0x58] sm:$0xff] %v78
    %s91 = sld [smem:[#allocation3]]
    %v92 = vstv %s91
    %v93 = vmul.f32 %v63, %v92
    %v94 = vmul.f32 %v64, %v92
    %v95 = vmul.f32 %v65, %v92
    %v96 = vmul.f32 %v66, %v92
    %s97 = sld [smem:[#allocation3 + $0x1]]
    %v98 = vstv %s97
    %v99 = vmul.f32 %v59, %v98
    %v100 = vmul.f32 %v60, %v98
    %v101 = vmul.f32 %v61, %v98
    %v102 = vmul.f32 %v62, %v98
    %s103 = sld [smem:[#allocation3 + $0x2]]
    %v104 = vstv %s103
    %v105 = vmul.f32 %v55, %v104
    %v106 = vmul.f32 %v56, %v104
    %v107 = vmul.f32 %v57, %v104
    %v108 = vmul.f32 %v58, %v104
    %v109 = vround.ne.pseudo %v93
    %v110 = vround.ne.pseudo %v94
    %v111 = vround.ne.pseudo %v95
    %v112 = vround.ne.pseudo %v96
    %v113 = vround.ne.pseudo %v99
    %v114 = vround.ne.pseudo %v100
    %v115 = vround.ne.pseudo %v101
    %v116 = vround.ne.pseudo %v102
    %v117 = vround.ne.pseudo %v105
    %v118 = vround.ne.pseudo %v106
    %v119 = vround.ne.pseudo %v107
    %v120 = vround.ne.pseudo %v108
    %v121 = vmax.f32 %v109, 0.0
    %v122 = vmax.f32 %v110, 0.0
    %v123 = vmax.f32 %v111, 0.0
    %v124 = vmax.f32 %v112, 0.0
    %v125 = vmax.f32 %v113, 0.0
    %v126 = vmax.f32 %v114, 0.0
    %v127 = vmax.f32 %v115, 0.0
    %v128 = vmax.f32 %v116, 0.0
    %v129 = vmax.f32 %v117, 0.0
    %v130 = vmax.f32 %v118, 0.0
    %v131 = vmax.f32 %v119, 0.0
    %v132 = vmax.f32 %v120, 0.0
    %v133 = vmin.f32 %v121, 255.0
    %v134 = vmin.f32 %v122, 255.0
    %v135 = vmin.f32 %v123, 255.0
    %v136 = vmin.f32 %v124, 255.0
    %v137 = vmin.f32 %v125, 255.0
    %v138 = vmin.f32 %v126, 255.0
    %v139 = vmin.f32 %v127, 255.0
    %v140 = vmin.f32 %v128, 255.0
    %v141 = vmin.f32 %v129, 255.0
    %v142 = vmin.f32 %v130, 255.0
    %v143 = vmin.f32 %v131, 255.0
    %v144 = vmin.f32 %v132, 255.0
    %v145 = vmul.f32 %v133, 0.003921569
    %v146 = vmul.f32 %v134, 0.003921569
    %v147 = vmul.f32 %v135, 0.003921569
    %v148 = vmul.f32 %v136, 0.003921569
    %v149 = vmul.f32 %v137, 0.003921569
    %v150 = vmul.f32 %v138, 0.003921569
    %v151 = vmul.f32 %v139, 0.003921569
    %v152 = vmul.f32 %v140, 0.003921569
    %v153 = vmul.f32 %v141, 0.003921569
    %v154 = vmul.f32 %v142, 0.003921569
    %v155 = vmul.f32 %v143, 0.003921569
    %v156 = vmul.f32 %v144, 0.003921569
    %s157 = scalar_lea.vmem [#allocation7], 96
    %158 = vst [vmem:[%s157] sm:$0xff] %v145
    %159 = vst [vmem:[%s157 + $0x8] sm:$0xff] %v146
    %160 = vst [vmem:[%s157 + $0x10] sm:$0xff] %v147
    %161 = vst [vmem:[%s157 + $0x18] sm:$0xff] %v148
    %162 = vst [vmem:[%s157 + $0x20] sm:$0xff] %v149
    %163 = vst [vmem:[%s157 + $0x28] sm:$0xff] %v150
    %164 = vst [vmem:[%s157 + $0x30] sm:$0xff] %v151
    %165 = vst [vmem:[%s157 + $0x38] sm:$0xff] %v152
    %166 = vst [vmem:[%s157 + $0x40] sm:$0xff] %v153
    %167 = vst [vmem:[%s157 + $0x48] sm:$0xff] %v154
    %168 = vst [vmem:[%s157 + $0x50] sm:$0xff] %v155
    %169 = vst [vmem:[%s157 + $0x58] sm:$0xff] %v156
    %v170 = vmul.f32 %v55, 1.2
    %v171 = vmul.f32 %v56, 1.2
    %v172 = vmul.f32 %v57, 1.2
    %v173 = vmul.f32 %v58, 1.2
    %v174 = vmul.f32 %v59, 1.2
    %v175 = vmul.f32 %v60, 1.2
    %v176 = vmul.f32 %v61, 1.2
    %v177 = vmul.f32 %v62, 1.2
    %v178 = vmul.f32 %v63, 1.2
    %v179 = vmul.f32 %v64, 1.2
    %v180 = vmul.f32 %v65, 1.2
    %v181 = vmul.f32 %v66, 1.2
    %v182 = vadd.f32 %v170, 30.0
    %v183 = vadd.f32 %v171, 30.0
    %v184 = vadd.f32 %v172, 30.0
    %v185 = vadd.f32 %v173, 30.0
    %v186 = vadd.f32 %v174, 30.0
    %v187 = vadd.f32 %v175, 30.0
    %v188 = vadd.f32 %v176, 30.0
    %v189 = vadd.f32 %v177, 30.0
    %v190 = vadd.f32 %v178, 30.0
    %v191 = vadd.f32 %v179, 30.0
    %v192 = vadd.f32 %v180, 30.0
    %v193 = vadd.f32 %v181, 30.0
    %v194 = vround.ne.pseudo %v182
    %v195 = vround.ne.pseudo %v183
    %v196 = vround.ne.pseudo %v184
    %v197 = vround.ne.pseudo %v185
    %v198 = vround.ne.pseudo %v186
    %v199 = vround.ne.pseudo %v187
    %v200 = vround.ne.pseudo %v188
    %v201 = vround.ne.pseudo %v189
    %v202 = vround.ne.pseudo %v190
    %v203 = vround.ne.pseudo %v191
    %v204 = vround.ne.pseudo %v192
    %v205 = vround.ne.pseudo %v193
    %v206 = vmax.f32 %v194, 0.0
    %v207 = vmax.f32 %v195, 0.0
    %v208 = vmax.f32 %v196, 0.0
    %v209 = vmax.f32 %v197, 0.0
    %v210 = vmax.f32 %v198, 0.0
    %v211 = vmax.f32 %v199, 0.0
    %v212 = vmax.f32 %v200, 0.0
    %v213 = vmax.f32 %v201, 0.0
    %v214 = vmax.f32 %v202, 0.0
    %v215 = vmax.f32 %v203, 0.0
    %v216 = vmax.f32 %v204, 0.0
    %v217 = vmax.f32 %v205, 0.0
    %v218 = vmin.f32 %v206, 255.0
    %v219 = vmin.f32 %v207, 255.0
    %v220 = vmin.f32 %v208, 255.0
    %v221 = vmin.f32 %v209, 255.0
    %v222 = vmin.f32 %v210, 255.0
    %v223 = vmin.f32 %v211, 255.0
    %v224 = vmin.f32 %v212, 255.0
    %v225 = vmin.f32 %v213, 255.0
    %v226 = vmin.f32 %v214, 255.0
    %v227 = vmin.f32 %v215, 255.0
    %v228 = vmin.f32 %v216, 255.0
    %v229 = vmin.f32 %v217, 255.0
    %v230 = vmul.f32 %v218, 0.003921569
    %v231 = vmul.f32 %v219, 0.003921569
    %v232 = vmul.f32 %v220, 0.003921569
    %v233 = vmul.f32 %v221, 0.003921569
    %v234 = vmul.f32 %v222, 0.003921569
    %v235 = vmul.f32 %v223, 0.003921569
    %v236 = vmul.f32 %v224, 0.003921569
    %v237 = vmul.f32 %v225, 0.003921569
    %v238 = vmul.f32 %v226, 0.003921569
    %v239 = vmul.f32 %v227, 0.003921569
    %v240 = vmul.f32 %v228, 0.003921569
    %v241 = vmul.f32 %v229, 0.003921569
    %s242 = scalar_lea.vmem [#allocation7], 192
    %243 = vst [vmem:[%s242] sm:$0xff] %v230
    %244 = vst [vmem:[%s242 + $0x8] sm:$0xff] %v231
    %245 = vst [vmem:[%s242 + $0x10] sm:$0xff] %v232
    %246 = vst [vmem:[%s242 + $0x18] sm:$0xff] %v233
    %247 = vst [vmem:[%s242 + $0x20] sm:$0xff] %v234
    %248 = vst [vmem:[%s242 + $0x28] sm:$0xff] %v235
    %249 = vst [vmem:[%s242 + $0x30] sm:$0xff] %v236
    %250 = vst [vmem:[%s242 + $0x38] sm:$0xff] %v237
    %251 = vst [vmem:[%s242 + $0x40] sm:$0xff] %v238
    %252 = vst [vmem:[%s242 + $0x48] sm:$0xff] %v239
    %253 = vst [vmem:[%s242 + $0x50] sm:$0xff] %v240
    %254 = vst [vmem:[%s242 + $0x58] sm:$0xff] %v241
    %vm255 = vcmp.gt.f32.partialorder %v67, 0.0
    %vm256 = vcmp.gt.f32.partialorder %v68, 0.0
    %vm257 = vcmp.gt.f32.partialorder %v69, 0.0
    %vm258 = vcmp.gt.f32.partialorder %v70, 0.0
    %vm259 = vcmp.gt.f32.partialorder %v71, 0.0
    %vm260 = vcmp.gt.f32.partialorder %v72, 0.0
    %vm261 = vcmp.gt.f32.partialorder %v73, 0.0
    %vm262 = vcmp.gt.f32.partialorder %v74, 0.0
    %vm263 = vcmp.gt.f32.partialorder %v75, 0.0
    %vm264 = vcmp.gt.f32.partialorder %v76, 0.0
    %vm265 = vcmp.gt.f32.partialorder %v77, 0.0
    %vm266 = vcmp.gt.f32.partialorder %v78, 0.0
    %v267 = vsel %vm255, %v67, 1.0
    %v268 = vsel %vm256, %v68, 1.0
    %v269 = vsel %vm257, %v69, 1.0
    %v270 = vsel %vm258, %v70, 1.0
    %v271 = vsel %vm259, %v71, 1.0
    %v272 = vsel %vm260, %v72, 1.0
    %v273 = vsel %vm261, %v73, 1.0
    %v274 = vsel %vm262, %v74, 1.0
    %v275 = vsel %vm263, %v75, 1.0
    %v276 = vsel %vm264, %v76, 1.0
    %v277 = vsel %vm265, %v77, 1.0
    %v278 = vsel %vm266, %v78, 1.0
    %v279 = vlog2.pop %v267
    %v280 = vmul.f32 %v279, 0.6931472
    %v281 = vlog2.pop %v268
    %v282 = vmul.f32 %v281, 0.6931472
    %v283 = vlog2.pop %v269
    %v284 = vmul.f32 %v283, 0.6931472
    %v285 = vlog2.pop %v270
    %v286 = vmul.f32 %v285, 0.6931472
    %v287 = vlog2.pop %v271
    %v288 = vmul.f32 %v287, 0.6931472
    %v289 = vlog2.pop %v272
    %v290 = vmul.f32 %v289, 0.6931472
    %v291 = vlog2.pop %v273
    %v292 = vmul.f32 %v291, 0.6931472
    %v293 = vlog2.pop %v274
    %v294 = vmul.f32 %v293, 0.6931472
    %v295 = vlog2.pop %v275
    %v296 = vmul.f32 %v295, 0.6931472
    %v297 = vlog2.pop %v276
    %v298 = vmul.f32 %v297, 0.6931472
    %v299 = vlog2.pop %v277
    %v300 = vmul.f32 %v299, 0.6931472
    %v301 = vlog2.pop %v278
    %v302 = vmul.f32 %v301, 0.6931472
    %v303 = vmul.f32 %v280, 2.5
    %v304 = vmul.f32 %v282, 2.5
    %v305 = vmul.f32 %v284, 2.5
    %v306 = vmul.f32 %v286, 2.5
    %v307 = vmul.f32 %v288, 2.5
    %v308 = vmul.f32 %v290, 2.5
    %v309 = vmul.f32 %v292, 2.5
    %v310 = vmul.f32 %v294, 2.5
    %v311 = vmul.f32 %v296, 2.5
    %v312 = vmul.f32 %v298, 2.5
    %v313 = vmul.f32 %v300, 2.5
    %v314 = vmul.f32 %v302, 2.5
    %v315 = vmul.f32 %v303, 1.442695
    %v316 = vpow.pop %v315
    %v317 = vmul.f32 %v304, 1.442695
    %v318 = vpow.pop %v317
    %v319 = vmul.f32 %v305, 1.442695
    %v320 = vpow.pop %v319
    %v321 = vmul.f32 %v306, 1.442695
    %v322 = vpow.pop %v321
    %v323 = vmul.f32 %v307, 1.442695
    %v324 = vpow.pop %v323
    %v325 = vmul.f32 %v308, 1.442695
    %v326 = vpow.pop %v325
    %v327 = vmul.f32 %v309, 1.442695
    %v328 = vpow.pop %v327
    %v329 = vmul.f32 %v310, 1.442695
    %v330 = vpow.pop %v329
    %v331 = vmul.f32 %v311, 1.442695
    %v332 = vpow.pop %v331
    %v333 = vmul.f32 %v312, 1.442695
    %v334 = vpow.pop %v333
    %v335 = vmul.f32 %v313, 1.442695
    %v336 = vpow.pop %v335
    %v337 = vmul.f32 %v314, 1.442695
    %v338 = vpow.pop %v337
    %v339 = vsel %vm255, %v316, 0.0
    %v340 = vsel %vm256, %v318, 0.0
    %v341 = vsel %vm257, %v320, 0.0
    %v342 = vsel %vm258, %v322, 0.0
    %v343 = vsel %vm259, %v324, 0.0
    %v344 = vsel %vm260, %v326, 0.0
    %v345 = vsel %vm261, %v328, 0.0
    %v346 = vsel %vm262, %v330, 0.0
    %v347 = vsel %vm263, %v332, 0.0
    %v348 = vsel %vm264, %v334, 0.0
    %v349 = vsel %vm265, %v336, 0.0
    %v350 = vsel %vm266, %v338, 0.0
    %v351 = vmul.f32 %v339, 255.0
    %v352 = vmul.f32 %v340, 255.0
    %v353 = vmul.f32 %v341, 255.0
    %v354 = vmul.f32 %v342, 255.0
    %v355 = vmul.f32 %v343, 255.0
    %v356 = vmul.f32 %v344, 255.0
    %v357 = vmul.f32 %v345, 255.0
    %v358 = vmul.f32 %v346, 255.0
    %v359 = vmul.f32 %v347, 255.0
    %v360 = vmul.f32 %v348, 255.0
    %v361 = vmul.f32 %v349, 255.0
    %v362 = vmul.f32 %v350, 255.0
    %v363 = vfloor.f32 %v351
    %v364 = vfloor.f32 %v352
    %v365 = vfloor.f32 %v353
    %v366 = vfloor.f32 %v354
    %v367 = vfloor.f32 %v355
    %v368 = vfloor.f32 %v356
    %v369 = vfloor.f32 %v357
    %v370 = vfloor.f32 %v358
    %v371 = vfloor.f32 %v359
    %v372 = vfloor.f32 %v360
    %v373 = vfloor.f32 %v361
    %v374 = vfloor.f32 %v362
    %v375 = vmul.f32 %v363, 0.003921569
    %v376 = vmul.f32 %v364, 0.003921569
    %v377 = vmul.f32 %v365, 0.003921569
    %v378 = vmul.f32 %v366, 0.003921569
    %v379 = vmul.f32 %v367, 0.003921569
    %v380 = vmul.f32 %v368, 0.003921569
    %v381 = vmul.f32 %v369, 0.003921569
    %v382 = vmul.f32 %v370, 0.003921569
    %v383 = vmul.f32 %v371, 0.003921569
    %v384 = vmul.f32 %v372, 0.003921569
    %v385 = vmul.f32 %v373, 0.003921569
    %v386 = vmul.f32 %v374, 0.003921569
    %s387 = scalar_lea.vmem [#allocation7], 288
    %388 = vst [vmem:[%s387] sm:$0xff] %v375
    %389 = vst [vmem:[%s387 + $0x8] sm:$0xff] %v376
    %390 = vst [vmem:[%s387 + $0x10] sm:$0xff] %v377
    %391 = vst [vmem:[%s387 + $0x18] sm:$0xff] %v378
    %392 = vst [vmem:[%s387 + $0x20] sm:$0xff] %v379
    %393 = vst [vmem:[%s387 + $0x28] sm:$0xff] %v380
    %394 = vst [vmem:[%s387 + $0x30] sm:$0xff] %v381
    %395 = vst [vmem:[%s387 + $0x38] sm:$0xff] %v382
    %396 = vst [vmem:[%s387 + $0x40] sm:$0xff] %v383
    %397 = vst [vmem:[%s387 + $0x48] sm:$0xff] %v384
    %398 = vst [vmem:[%s387 + $0x50] sm:$0xff] %v385
    %399 = vst [vmem:[%s387 + $0x58] sm:$0xff] %v386
    // Predicated region
    $region10: #{tpu_custom_call.1} parent=1 // pred_check
      _
    $region11: #{tpu_custom_call.1} parent=1 // pred_check_branch
      %401 = sbr.rel (0) target = $region13
    $region12: #{tpu_custom_call.1} parent=1 // pred_region
      %s403 = ssub.s32 6144, 6144
      %404 = vsyncadd [#allocation6], %s403
      %s405 = sshll.u32 [#allocation7], 4
      %s406 = int_to_ptr.vmem [resolvable:$true] %s405
      %411 = dma.vmem_to_hbm [thread:$0]  %s406, 6144, %s2, [#allocation6], 128, 128, 8
    $region13: #{tpu_custom_call.1} parent=1 // pred_fallthru
      _
    // Predicated region
    $region14: #{tpu_custom_call.1} parent=1 // pred_check
      _
    $region15: #{tpu_custom_call.1} parent=1 // pred_check_branch
      %413 = sbr.rel (0) target = $region17
    $region16: #{tpu_custom_call.1} parent=1 // pred_region
      %414 = dma.done [#allocation6], 6144
    $region17: #{tpu_custom_call.1} parent=1 // pred_fallthru
      _
    %415 = vsyncpa [#allocation5], 1
    %416 = vsyncpa [#allocation6], 1

</llo_original>
